<compile_context>
chip_gen: v7x
topology: tpu7x:2x2x1
jax: 0.10.0
libtpu: 0.0.40
codegen_flags: <defaults>
</compile_context>

<pallas_src>
import jax
import jax.numpy as jnp
from jax import lax
from jax.experimental import pallas as pl
from jax.experimental.pallas import tpu as pltpu

_TB_MAX = 2048   # max batch-tile rows (f32 x tile 256 KiB + out tile 256 KiB)


def _categorical_kernel(x_ref, w_ref, b_ref, out_ref):
    # x_ref: (TB, D)   w_ref: (N, D)   b_ref: (N, 1)   out_ref: (2N, TB)
    #
    # z^T = W @ x^T + b : classes on sublanes, batch on lanes (MXU, f32 acc).
    zt = lax.dot_general(
        w_ref[...], x_ref[...],
        dimension_numbers=(((1,), (1,)), ((), ())),   # contract both last dims
        preferred_element_type=jnp.float32,
    ) + b_ref[...]

    # Stable logsumexp / softmax over the class (sublane) axis.
    m = jnp.max(zt, axis=0, keepdims=True)       # (1, TB)  cross-sublane (XLU)
    e = jnp.exp(zt - m)                          # EUP
    s = jnp.sum(e, axis=0, keepdims=True)        # (1, TB)
    logits_t = zt - (m + jnp.log(s))             # normalized logits
    probs_t = e / s                              # exact divide (VALU slack is huge)

    # Single packed, padding-free store: [logits^T ; probs^T] -> (2N, TB).
    out_ref[...] = jnp.concatenate([logits_t, probs_t], axis=0).astype(out_ref.dtype)


def prepare_params(weight, bias):
    """One-time (init) param prep.

    weight: (N, D) PyTorch layout, bias: (N,).  No transpose / lane padding is
    needed with the transposed-output kernel; just cast to f32 and make the
    bias a (N, 1) column so it broadcasts over the lane (batch) axis.
    """
    w = jnp.asarray(weight, jnp.float32)
    b_col = jnp.asarray(bias, jnp.float32).reshape(-1, 1)
    return w, b_col


def _round_up(v, m):
    return ((v + m - 1) // m) * m


def _pick_batch_tile(batch):
    if batch <= 1024:
        return batch                     # single full-extent tile (always legal)
    # >= 2 grid steps so v7x megacore 'parallel' sharding keeps both TCs busy;
    # keep the output lane axis a multiple of 128 (unmasked lane-dense stores).
    return min(_TB_MAX, _round_up(pl.cdiv(batch, 2), 128))


def categorical_forward(x, w, b_col, out_dtype=jnp.float32):
    """Fused linear + Categorical(logits=...) parameterization.

    Returns a packed (2*N, B) array:
      rows [0:N]   -> normalized logits, transposed  (logits^T)
      rows [N:2N]  -> probs, transposed              (probs^T)
    Consumers should index/fuse this directly; see `unpack_torch_layout` for
    the (B, N) torch layout (verification only).
    """
    x = x.astype(jnp.float32)            # no-op for f32 inputs
    batch, d = x.shape
    n = w.shape[0]

    tb = _pick_batch_tile(batch)
    grid = (pl.cdiv(batch, tb),)

    return pl.pallas_call(
        _categorical_kernel,
        out_shape=jax.ShapeDtypeStruct((2 * n, batch), out_dtype),
        grid=grid,
        in_specs=[
            pl.BlockSpec((tb, d), lambda i: (i, 0)),     # x batch tile
            pl.BlockSpec((n, d), lambda i: (0, 0)),      # weight (VMEM-resident)
            pl.BlockSpec((n, 1), lambda i: (0, 0)),      # bias column (resident)
        ],
        out_specs=pl.BlockSpec((2 * n, tb), lambda i: (0, i)),
        compiler_params=pltpu.CompilerParams(
            dimension_semantics=("parallel",),           # megacore on v7x
        ),
    )(x, w, b_col)


def unpack_torch_layout(packed, num_outputs):
    """(2N, B) packed slab -> (logits (B,N), probs (B,N)).

    Verification / torch-layout consumers only; not part of the hot forward
    path (production code should consume the packed slab or fuse this head).
    """
    logits = packed[:num_outputs, :].T
    probs = packed[num_outputs:2 * num_outputs, :].T
    return logits, probs


def orthogonal_init(key, out_features, in_features, gain=0.01):
    """Deterministic replica of nn.init.orthogonal_ (QR of a normal matrix)."""
    rows, cols = out_features, in_features
    flat = jax.random.normal(key, (rows, cols), dtype=jnp.float32)
    if rows < cols:
        flat = flat.T
    q, r = jnp.linalg.qr(flat)
    d = jnp.sign(jnp.diagonal(r))
    q = q * d[None, :]
    if rows < cols:
        q = q.T
    return gain * q.astype(jnp.float32)


if __name__ == "__main__":
    # Shapes implied by the module: num_inputs (hidden) = 32, num_outputs = 16.
    batch, num_inputs, num_outputs = 8, 32, 16

    key = jax.random.PRNGKey(0)
    kx, kw = jax.random.split(key)

    x = jax.random.normal(kx, (batch, num_inputs), dtype=jnp.float32)
    weight = orthogonal_init(kw, num_outputs, num_inputs, gain=0.01)   # (N, D)
    bias = jnp.zeros((num_outputs,), dtype=jnp.float32)                # constant 0

    # Init-time prep (done once, outside the per-step forward path).
    w, b_col = prepare_params(weight, bias)

    fwd = jax.jit(categorical_forward, static_argnames=("out_dtype",))

    # --- f32 output (default; exact torch parity) -------------------------
    packed = fwd(x, w, b_col)
    jax.block_until_ready(packed)
    assert packed.shape == (2 * num_outputs, batch)
    logits, probs = unpack_torch_layout(packed, num_outputs)

    # Reference in plain JAX (linear + Categorical normalization).
    z_ref = x @ weight.T + bias
    logits_ref = z_ref - jax.scipy.special.logsumexp(z_ref, axis=-1, keepdims=True)
    probs_ref = jax.nn.softmax(z_ref, axis=-1)

    assert logits.shape == (batch, num_outputs) and probs.shape == (batch, num_outputs)
    assert jnp.allclose(logits, logits_ref, atol=1e-5), "logits mismatch"
    assert jnp.allclose(probs, probs_ref, atol=1e-5), "probs mismatch"
    assert jnp.allclose(jnp.sum(probs, axis=-1), 1.0, atol=1e-5), "probs not normalized"

    # --- bf16 output variant (halves writeback bytes again) ---------------
    packed_bf16 = fwd(x, w, b_col, out_dtype=jnp.bfloat16)
    jax.block_until_ready(packed_bf16)
    lg16, pr16 = unpack_torch_layout(packed_bf16.astype(jnp.float32), num_outputs)
    assert jnp.allclose(lg16, logits_ref, atol=2e-2), "bf16 logits mismatch"
    assert jnp.allclose(pr16, probs_ref, atol=5e-3), "bf16 probs mismatch"

    # TODO(synk): sampling / log_prob / entropy of FixedCategorical are
    # distribution methods, not part of forward(); only the distribution
    # parameters (normalized logits, probs) are produced here.
    print("KERNEL_OK")
</pallas_src>

<mosaic_0001>
module attributes {stable_mosaic.version = 11 : i64} {
  func.func @_categorical_kernel(%arg0: i32, %arg1: memref<8x32xf32, #tpu.memory_space<vmem>>, %arg2: memref<16x32xf32, #tpu.memory_space<vmem>>, %arg3: memref<16x1xf32, #tpu.memory_space<vmem>>, %arg4: memref<32x8xf32, #tpu.memory_space<vmem>>) attributes {dimension_semantics = [#tpu.dimension_semantics<parallel>], iteration_bounds = array<i64: 1>, scalar_prefetch = 0 : i64, scratch_operands = 0 : i64, tpu.core_type = #tpu.core_type<tc>, window_params = [{transform_indices = @transform_0, window_bounds = array<i64: 8, 32>}, {pipeline_mode = #tpu.pipeline_mode<synchronous>, transform_indices = @transform_1, window_bounds = array<i64: 16, 32>}, {pipeline_mode = #tpu.pipeline_mode<synchronous>, transform_indices = @transform_2, window_bounds = array<i64: 16, 1>}, {transform_indices = @transform_3, window_bounds = array<i64: 32, 8>}]} {
    %c0 = arith.constant 0 : index
    %c0_0 = arith.constant 0 : index
    %0 = vector.load %arg2[%c0, %c0_0] : memref<16x32xf32, #tpu.memory_space<vmem>>, vector<16x32xf32>
    %c0_1 = arith.constant 0 : index
    %c0_2 = arith.constant 0 : index
    %1 = vector.load %arg1[%c0_1, %c0_2] : memref<8x32xf32, #tpu.memory_space<vmem>>, vector<8x32xf32>
    %cst = arith.constant dense<0.000000e+00> : vector<16x8xf32>
    %2 = tpu.matmul %0, %1, %cst {dimension_numbers = #tpu.dot_dimension_numbers<[1], [1], [0], [0], [0, 0, 1, 0], [], []>} : vector<16x32xf32>, vector<8x32xf32>, vector<16x8xf32> -> vector<16x8xf32>
    %c0_3 = arith.constant 0 : index
    %c0_4 = arith.constant 0 : index
    %3 = vector.load %arg3[%c0_3, %c0_4] : memref<16x1xf32, #tpu.memory_space<vmem>>, vector<16x1xf32>
    %4 = vector.broadcast %3 : vector<16x1xf32> to vector<16x8xf32>
    %5 = arith.addf %2, %4 : vector<16x8xf32>
    %cst_5 = arith.constant dense<0xFF800000> : vector<8xf32>
    %6 = vector.multi_reduction <maximumf>, %5, %cst_5 [0] : vector<16x8xf32> to vector<8xf32>
    %7 = vector.shape_cast %6 : vector<8xf32> to vector<1x8xf32>
    %8 = vector.broadcast %7 : vector<1x8xf32> to vector<16x8xf32>
    %9 = arith.subf %5, %8 : vector<16x8xf32>
    %10 = math.exp %9 : vector<16x8xf32>
    %cst_6 = arith.constant dense<0.000000e+00> : vector<8xf32>
    %11 = vector.multi_reduction <add>, %10, %cst_6 [0] : vector<16x8xf32> to vector<8xf32>
    %12 = vector.shape_cast %11 : vector<8xf32> to vector<1x8xf32>
    %13 = math.log %12 : vector<1x8xf32>
    %14 = arith.addf %7, %13 : vector<1x8xf32>
    %15 = vector.broadcast %14 : vector<1x8xf32> to vector<16x8xf32>
    %16 = arith.subf %5, %15 : vector<16x8xf32>
    %17 = vector.broadcast %12 : vector<1x8xf32> to vector<16x8xf32>
    %18 = arith.divf %10, %17 : vector<16x8xf32>
    %19 = tpu.concatenate %16, %18 in 0 : vector<16x8xf32>, vector<16x8xf32> -> vector<32x8xf32>
    %c0_7 = arith.constant 0 : index
    %c0_8 = arith.constant 0 : index
    %20 = vector.load %arg4[%c0_7, %c0_8] : memref<32x8xf32, #tpu.memory_space<vmem>>, vector<32x8xf32>
    tpu.vector_store %arg4[%c0_7, %c0_8], %19 {strides = array<i32>} : memref<32x8xf32, #tpu.memory_space<vmem>>, vector<32x8xf32>,
    return
  }
  func.func @transform_0(%arg0: i32) -> (i32, i32) {
    %c0_i32 = arith.constant 0 : i32
    %c0_i32_0 = arith.constant 0 : i32
    return %arg0, %c0_i32 : i32, i32
  }
  func.func @transform_1(%arg0: i32) -> (i32, i32) {
    %c0_i32 = arith.constant 0 : i32
    %c0_i32_0 = arith.constant 0 : i32
    %c0_i32_1 = arith.constant 0 : i32
    return %c0_i32, %c0_i32_0 : i32, i32
  }
  func.func @transform_2(%arg0: i32) -> (i32, i32) {
    %c0_i32 = arith.constant 0 : i32
    %c0_i32_0 = arith.constant 0 : i32
    %c0_i32_1 = arith.constant 0 : i32
    return %c0_i32, %c0_i32_0 : i32, i32
  }
  func.func @transform_3(%arg0: i32) -> (i32, i32) {
    %c0_i32 = arith.constant 0 : i32
    %c0_i32_0 = arith.constant 0 : i32
    return %c0_i32, %arg0 : i32, i32
  }
}

</mosaic_0001>

<llo_original>
// kernel: categorical_forward.1
$region0: #{categorical_forward.1}
  #allocation0 [shape = 'u32[]', space=smem, size = 0x4, offset = 0x4, fixed_abs, tag = 'smem constant byte address 0x4 - core index']
  #allocation1 [shape = 'u32[144,128]{1,0:T(1,128)}', space=vmem, size = 0x12000, scoped, tag = 'internal scratch']
  %s0 = inlined_call_operand.hbm [shape: f32[8,32], index: 0, kind: input, shape index: {}]
  %s1 = inlined_call_operand.vmem [shape: f32[16,32], index: 1, kind: input, shape index: {}]
  %s2 = inlined_call_operand.vmem [shape: f32[16,1], index: 2, kind: input, shape index: {}]
  %s3 = inlined_call_operand.vmem [shape: f32[32,8], index: 3, kind: output, shape index: {}]
  %s4 = sld [smem:[#allocation0]]
  $region26: #{categorical_forward.1} parent=0
    _
  %s6 = ssub.s32 1, %s4
  %s7 = scalar_select 0, %s6, %s4
  $region1: #{categorical_forward.1} parent=0
    #allocation2 [shape = 'u8[4096]{0}', space=vmem, size = 0x1000, scoped, tag = 'input window, operand 0, single buffered']
    #allocation3 [shape = 's32[1]{0}', space=sflag, size = 0x4, scoped, tag = 'scoped memory for categorical_forward.1']
    %8 = vsyncpa [#allocation3], 0
    // Predicated region
    $region2: #{categorical_forward.1} parent=1 // pred_check
      _
    $region3: #{categorical_forward.1} parent=1 // pred_check_branch
      %10 = sbr.rel (0) target = $region5
    $region4: #{categorical_forward.1} parent=1 // pred_region
      %s12 = ssub.s32 128, 128
      %13 = vsyncadd [#allocation3], %s12
      %s15 = sshll.u32 [#allocation2], 4
      %s16 = int_to_ptr.vmem [resolvable:$true] %s15
      %18 = dma.hbm_to_vmem [thread:$0]  %s0, 128, %s16, [#allocation3]
    $region5: #{categorical_forward.1} parent=1 // pred_fallthru
      _
    // Predicated region
    $region6: #{categorical_forward.1} parent=1 // pred_check
      _
    $region7: #{categorical_forward.1} parent=1 // pred_check_branch
      %20 = sbr.rel (0) target = $region9
    $region8: #{categorical_forward.1} parent=1 // pred_region
      _
    $region9: #{categorical_forward.1} parent=1 // pred_fallthru
      _
    // Predicated region
    $region10: #{categorical_forward.1} parent=1 // pred_check
      _
    $region11: #{categorical_forward.1} parent=1 // pred_check_branch
      %22 = sbr.rel (0) target = $region13
    $region12: #{categorical_forward.1} parent=1 // pred_region
      _
    $region13: #{categorical_forward.1} parent=1 // pred_fallthru
      _
    // Predicated region
    $region14: #{categorical_forward.1} parent=1 // pred_check
      _
    $region15: #{categorical_forward.1} parent=1 // pred_check_branch
      %24 = sbr.rel (0) target = $region17
    $region16: #{categorical_forward.1} parent=1 // pred_region
      %25 = dma.done [#allocation3], 128
    $region17: #{categorical_forward.1} parent=1 // pred_fallthru
      _
    %v26 = vld [vmem:[%s1] sm:$0xff]
    %v27 = vld [vmem:[%s1 + $0x8] sm:$0xff]
    %v28 = vld [vmem:[#allocation2] sm:$0xff]
    %v29 = vld [vmem:[%s2] sm:$0xff]
    %v30 = vld [vmem:[%s2 + $0x8] sm:$0xff]
    %32 = vset.pattern.permute.xlu0 0
    %33 = vperm.xlu0 %32, %v29
    %v34 = vpop.permute.xlu0 %33
    %37 = vset.pattern.permute.xlu0 0
    %38 = vperm.xlu0 %37, %v30
    %v39 = vpop.permute.xlu0 %38
    %vm41 = vcmask 261120
    %v43 = vsel %vm41, %v26, 0
    %v46 = vsel %vm41, %v27, 0
    %v49 = vsel %vm41, %v28, 0
    %51 = vmatprep.subr.mxu0 0.0
    %52 = vmatpush1.xpose.msra.mxu0 %v49
    %53 = vmatprep.subr.mxu0 0.0
    %54 = vmatpush1.xpose.msra.mxu0 0.0
    %55 = vmatprep.subr.mxu0 0.0
    %56 = vmatpush1.xpose.msra.mxu0 0.0
    %57 = vmatprep.subr.mxu0 0.0
    %58 = vmatpush1.xpose.msra.mxu0 0.0
    %59 = vmatprep.subr.mxu0 0.0
    %60 = vmatpush1.xpose.msra.mxu0 0.0
    %61 = vmatprep.subr.mxu0 0.0
    %62 = vmatpush1.xpose.msra.mxu0 0.0
    %63 = vmatprep.subr.mxu0 0.0
    %64 = vmatpush1.xpose.msra.mxu0 0.0
    %65 = vmatprep.subr.mxu0 0.0
    %66 = vmatpush1.xpose.msra.mxu0 0.0
    %67 = vmatprep.subr.mxu0 0.0
    %68 = vmatpush1.xpose.msra.mxu0 0.0
    %69 = vmatprep.subr.mxu0 0.0
    %70 = vmatpush1.xpose.msra.mxu0 0.0
    %71 = vmatprep.subr.mxu0 0.0
    %72 = vmatpush1.xpose.msra.mxu0 0.0
    %73 = vmatprep.subr.mxu0 0.0
    %74 = vmatpush1.xpose.msra.mxu0 0.0
    %75 = vmatprep.subr.mxu0 0.0
    %76 = vmatpush1.xpose.msra.mxu0 0.0
    %77 = vmatprep.subr.mxu0 0.0
    %78 = vmatpush1.xpose.msra.mxu0 0.0
    %79 = vmatprep.subr.mxu0 0.0
    %80 = vmatpush1.xpose.msra.mxu0 0.0
    %81 = vmatprep.subr.mxu0 0.0
    %82 = vmatpush1.xpose.msra.mxu0 0.0
    %83 = vmatprep.subr.mxu0 0.0
    %84 = vmatpush1.xpose.msra.mxu0 0.0
    %85 = vmatprep.subr.mxu0 0.0
    %86 = vmatpush1.xpose.msra.mxu0 0.0
    %87 = vmatprep.subr.mxu0 0.0
    %88 = vmatpush1.xpose.msra.mxu0 0.0
    %89 = vmatprep.subr.mxu0 0.0
    %90 = vmatpush1.xpose.msra.mxu0 0.0
    %91 = vmatprep.subr.mxu0 0.0
    %92 = vmatpush1.xpose.msra.mxu0 0.0
    %93 = vmatprep.subr.mxu0 0.0
    %94 = vmatpush1.xpose.msra.mxu0 0.0
    %95 = vmatprep.subr.mxu0 0.0
    %96 = vmatpush1.xpose.msra.mxu0 0.0
    %97 = vmatprep.subr.mxu0 0.0
    %98 = vmatpush1.xpose.msra.mxu0 0.0
    %99 = vmatprep.subr.mxu0 0.0
    %100 = vmatpush1.xpose.msra.mxu0 0.0
    %101 = vmatprep.subr.mxu0 0.0
    %102 = vmatpush1.xpose.msra.mxu0 0.0
    %103 = vmatprep.subr.mxu0 0.0
    %104 = vmatpush1.xpose.msra.mxu0 0.0
    %105 = vmatprep.subr.mxu0 0.0
    %106 = vmatpush1.xpose.msra.mxu0 0.0
    %107 = vmatprep.subr.mxu0 0.0
    %108 = vmatpush1.xpose.msra.mxu0 0.0
    %109 = vmatprep.subr.mxu0 0.0
    %110 = vmatpush1.xpose.msra.mxu0 0.0
    %111 = vmatprep.subr.mxu0 0.0
    %112 = vmatpush1.xpose.msra.mxu0 0.0
    %113 = vmatprep.subr.mxu0 0.0
    %114 = vmatpush1.xpose.msra.mxu0 0.0
    %115 = vmatprep.mubr.f32.mxu0 0.0
    %116 = vmatmul.mubr.f32.gmra.mrb[0].mxu0 %v43
    %v117 = vpop.f32.mrb[0].mxu0
    %v118 = vadd.f32 %v34, %v117
    %v119 = vpop.f32.mrb[0].mxu0
    %120 = vmatprep.mubr.f32.mxu0 0.0
    %121 = vmatmul.mubr.f32.gmra.mrb[0].mxu0 %v46
    %v122 = vpop.f32.mrb[0].mxu0
    %v123 = vadd.f32 %v39, %v122
    %v124 = vpop.f32.mrb[0].mxu0
    %125 = vdwg.mxu0
    %vm126 = vcmask 64512
    %v127 = vsel %vm126, %v118, -inf
    %v128 = vsel %vm126, %v123, -inf
    %v129 = vmax.f32 %v127, %v128
    %v130 = vrot.slane %v129, 4
    %v131 = vmax.f32 %v129, %v130
    %v132 = vrot.slane %v131, 2
    %v133 = vmax.f32 %v131, %v132
    %v134 = vrot.slane %v133, 1
    %v135 = vmax.f32 %v133, %v134
    %v136 = vsub.f32 %v118, %v135
    %v137 = vsub.f32 %v123, %v135
    %v138 = vmul.f32 %v136, 1.442695
    %v139 = vpow.pop %v138
    %v140 = vmul.f32 %v137, 1.442695
    %v141 = vpow.pop %v140
    %v142 = vsel %vm126, %v139, 0.0
    %v143 = vsel %vm126, %v141, 0.0
    %v144 = vadd.f32 %v142, %v143
    %v145 = vrot.slane %v144, 4
    %v146 = vadd.f32 %v144, %v145
    %v147 = vrot.slane %v146, 2
    %v148 = vadd.f32 %v146, %v147
    %v149 = vrot.slane %v148, 1
    %v150 = vadd.f32 %v148, %v149
    %v151 = vlog2.pop %v150
    %v152 = vmul.f32 %v151, 0.6931472
    %v153 = vadd.f32 %v135, %v152
    %v154 = vsub.f32 %v118, %v153
    %v155 = vsub.f32 %v123, %v153
    %v156 = vrcp.pop %v150
    %v157 = vmul.f32 %v139, %v156
    %v158 = vmul.f32 %v141, %v156
    %159 = vst.msk [vmem:[%s3] sm:$0xff] %vm126, %v154
    %160 = vst.msk [vmem:[%s3 + $0x8] sm:$0xff] %vm126, %v155
    %161 = vst.msk [vmem:[%s3 + $0x10] sm:$0xff] %vm126, %v157
    %162 = vst.msk [vmem:[%s3 + $0x18] sm:$0xff] %vm126, %v158
    // Predicated region
    $region18: #{categorical_forward.1} parent=1 // pred_check
      _
    $region19: #{categorical_forward.1} parent=1 // pred_check_branch
      %164 = sbr.rel (0) target = $region21
    $region20: #{categorical_forward.1} parent=1 // pred_region
      _
    $region21: #{categorical_forward.1} parent=1 // pred_fallthru
      _
    // Predicated region
    $region22: #{categorical_forward.1} parent=1 // pred_check
      _
    $region23: #{categorical_forward.1} parent=1 // pred_check_branch
      %166 = sbr.rel (0) target = $region25
    $region24: #{categorical_forward.1} parent=1 // pred_region
      _
    $region25: #{categorical_forward.1} parent=1 // pred_fallthru
      _
    %167 = vsyncpa [#allocation3], 1

</llo_original>
